<compile_context>
chip_gen: v7x
topology: tpu7x:2x2x1
jax: 0.10.0
libtpu: 0.0.40
codegen_flags: <defaults>
</compile_context>

<pallas_src>
import functools

import jax
import jax.numpy as jnp
from jax.experimental import pallas as pl
from jax.experimental.pallas import tpu as pltpu


def _cdiv(a: int, b: int) -> int:
    return -(-a // b)


# ---------------------------------------------------------------------------
# Kernel: each input row holds `groups` consecutive pooling groups; each group
# is `scale` contiguous chunks of `w` lanes.  Each output row holds the
# `groups` means back-to-back (groups*w lanes) -> one dense store per block.
# ---------------------------------------------------------------------------
def _pool_rows_kernel(x_ref, o_ref, *, scale: int, w: int, groups: int):
    # Mean computed as sum * (1/scale) in f32 (<=1 ulp off true division).
    inv = 1.0 / scale
    cols = []
    for g in range(groups):
        base = g * scale * w
        acc = x_ref[:, pl.ds(base, w)].astype(jnp.float32)
        for s in range(1, scale):
            acc = acc + x_ref[:, pl.ds(base + s * w, w)].astype(jnp.float32)
        cols.append(acc * inv)
    out = cols[0] if groups == 1 else jnp.concatenate(cols, axis=1)
    o_ref[...] = out.astype(o_ref.dtype)


def _chip_heuristics():
    """(target input-block bytes, multi-TensorCore hint, VMEM capacity)."""
    vmem_cap = 128 * 2**20
    try:
        vmem_cap = int(pltpu.get_tpu_info().vmem_capacity_bytes)
    except Exception:
        pass
    if vmem_cap <= 64 * 2**20:
        # v7x-class: 2 TCs, ~1.6 TB/s/TC HBM -> bigger blocks, even grid length.
        return 6 * 2**20, True, vmem_cap
    # v5e / v6e: single TC; ~2 MiB blocks already reach >=85% of HBM roofline.
    return 2 * 2**20, False, vmem_cap


def _choose_block_rows(total_rows: int, row_bytes: int, target_bytes: int,
                       multi_core: bool) -> int:
    tr = max(1, target_bytes // max(1, row_bytes))
    if tr >= total_rows:
        # Whole problem fits in one block.  Split in two only on multi-TC chips
        # and only when both halves stay sublane-full (multiple of 8).
        if multi_core and total_rows >= 16 and total_rows % 16 == 0:
            return total_rows // 2
        return total_rows
    tr = max(8, (tr // 8) * 8)  # full-sublane blocks -> unmasked stores
    if multi_core:
        steps = _cdiv(total_rows, tr)
        if steps > 1 and steps % 2 == 1:
            # Shrink a little (multiples of 8) so both TCs get equal work.
            lo = max(8, (tr // 2 // 8) * 8)
            cand = tr - 8
            while cand >= lo:
                if _cdiv(total_rows, cand) % 2 == 0:
                    tr = cand
                    break
                cand -= 8
    return tr


def _pooled_rows(x2: jax.Array, groups: int, scale: int, w: int) -> jax.Array:
    """x2: (rows, in_cols); each row = groups*scale*w lanes (+ ignored tail).

    Returns (rows, groups*w): per-row, per-group means.
    """
    rows, in_cols = x2.shape
    out_cols = groups * w
    itemsize = jnp.dtype(x2.dtype).itemsize

    target_bytes, multi_core, vmem_cap = _chip_heuristics()
    tr = _choose_block_rows(rows, in_cols * itemsize, target_bytes, multi_core)
    grid = (_cdiv(rows, tr),)

    in_block_bytes = tr * in_cols * itemsize
    out_block_bytes = tr * out_cols * itemsize
    vmem_limit = int(min(max(4 * (in_block_bytes + out_block_bytes), 8 * 2**20),
                         min(48 * 2**20, vmem_cap - 8 * 2**20)))

    kernel = functools.partial(_pool_rows_kernel, scale=scale, w=w, groups=groups)
    cost = pl.CostEstimate(
        flops=rows * out_cols * scale,
        transcendentals=0,
        bytes_accessed=rows * in_cols * itemsize + rows * out_cols * itemsize,
    )

    return pl.pallas_call(
        kernel,
        out_shape=jax.ShapeDtypeStruct((rows, out_cols), x2.dtype),
        grid_spec=pltpu.PrefetchScalarGridSpec(
            num_scalar_prefetch=0,
            grid=grid,
            in_specs=[pl.BlockSpec((tr, in_cols), lambda i: (i, 0))],
            out_specs=pl.BlockSpec((tr, out_cols), lambda i: (i, 0)),
        ),
        compiler_params=pltpu.CompilerParams(
            dimension_semantics=("parallel",),
            vmem_limit_bytes=vmem_limit,
        ),
        cost_estimate=cost,
    )(x2)


def coarse_grain(x: jax.Array, scale: int) -> jax.Array:
    """Pallas TPU implementation of CoarseGrain.forward for NCHW float inputs."""
    assert x.ndim == 4, "expected NCHW input"
    assert jnp.issubdtype(x.dtype, jnp.floating), "CoarseGrain expects a floating dtype"
    n, c, h, w = x.shape
    scale = int(scale)
    h_out = h // scale
    assert h_out >= 1, "scale larger than dim 2"

    itemsize = jnp.dtype(x.dtype).itemsize

    if h % scale == 0:
        # Fast path: crop is a no-op, flattening is a free contiguous reshape.
        r_out = n * c * h_out
        if w >= 128:
            k = 1
        else:
            # Pack k consecutive output rows per physical row -> lane-dense stores.
            k = 1
            for cand in range(max(1, 128 // w), 0, -1):
                if r_out % cand == 0:
                    k = cand
                    break
        x2 = x.reshape(r_out // k, k * scale * w)
        out2 = _pooled_rows(x2, groups=k, scale=scale, w=w)
        return out2.reshape(n, c, h_out, w)

    # Ragged H: unfold drops the trailing H % scale rows.  Avoid the hidden
    # full-tensor copy a crop+reshape would cost by treating each (n, c) slab
    # as one row of H*W lanes; the trailing lanes are simply never read.
    b = n * c
    slab_bytes = h * w * itemsize
    unroll = h_out * scale
    fits = min(b, 8) * slab_bytes <= 8 * 2**20
    if unroll <= 256 and fits:
        x2 = x.reshape(b, h * w)
        out2 = _pooled_rows(x2, groups=h_out, scale=scale, w=w)
        return out2.reshape(n, c, h_out, w)

    # Fallback for very large ragged slabs: materialize the crop (one extra
    # HBM pass), then use the fast path.
    # TODO(synk): tile ragged-H slabs along H as well to avoid this copy.
    return coarse_grain(x[:, :, : h_out * scale, :], scale)


def _reference(x, scale):
    n, c, h, w = x.shape
    h_out = h // scale
    return x[:, :, : h_out * scale, :].reshape(n, c, h_out, scale, w).mean(axis=3)


if __name__ == "__main__":
    key = jax.random.PRNGKey(0)
    k1, k2, k3 = jax.random.split(key, 3)

    # 1) Main check: small NCHW float32 input, H divisible by scale
    #    (fast path; W=16 < 128 so output is lane-packed 8 rows -> 128 lanes).
    N, C, H, W, SCALE = 2, 4, 16, 16, 4
    x = jax.random.normal(k1, (N, C, H, W), dtype=jnp.float32)
    out = jax.block_until_ready(coarse_grain(x, SCALE))
    ref = _reference(x, SCALE)
    assert out.shape == (N, C, H // SCALE, W), out.shape
    assert jnp.allclose(out, ref, atol=1e-5, rtol=1e-5), "mismatch vs reference"

    # 2) Ragged H (H % scale != 0): trailing rows dropped, zero-copy slab path.
    x2 = jax.random.normal(k2, (1, 3, 10, 16), dtype=jnp.float32)
    out2 = jax.block_until_ready(coarse_grain(x2, 3))
    ref2 = _reference(x2, 3)
    assert out2.shape == (1, 3, 3, 16), out2.shape
    assert jnp.allclose(out2, ref2, atol=1e-5, rtol=1e-5), "mismatch (ragged H)"

    # 3) bfloat16 input, W = 128 (aligned lane slices, half the HBM traffic).
    x3 = jax.random.normal(k3, (2, 4, 32, 128), dtype=jnp.float32)
    x3b = x3.astype(jnp.bfloat16)
    out3 = jax.block_until_ready(coarse_grain(x3b, 4))
    ref3 = _reference(x3b.astype(jnp.float32), 4)
    assert out3.shape == (2, 4, 8, 128), out3.shape
    assert out3.dtype == jnp.bfloat16
    assert jnp.allclose(out3.astype(jnp.float32), ref3, atol=1e-2, rtol=1e-2), \
        "mismatch (bf16)"

    print("KERNEL_OK")
</pallas_src>

<mosaic_0001>
module attributes {stable_mosaic.version = 11 : i64} {
  func.func @_pool_rows_kernel(%arg0: i32, %arg1: memref<4x512xf32, #tpu.memory_space<vmem>>, %arg2: memref<4x128xf32, #tpu.memory_space<vmem>>) attributes {dimension_semantics = [#tpu.dimension_semantics<parallel>], iteration_bounds = array<i64: 1>, scalar_prefetch = 0 : i64, scratch_operands = 0 : i64, tpu.core_type = #tpu.core_type<tc>, window_params = [{transform_indices = @transform_0, window_bounds = array<i64: 4, 512>}, {transform_indices = @transform_1, window_bounds = array<i64: 4, 128>}]} {
    %c0 = arith.constant 0 : index
    %c0_0 = arith.constant 0 : index
    %0 = vector.load %arg1[%c0, %c0_0] : memref<4x512xf32, #tpu.memory_space<vmem>>, vector<4x16xf32>
    %c0_1 = arith.constant 0 : index
    %c16 = arith.constant 16 : index
    %1 = vector.load %arg1[%c0_1, %c16] : memref<4x512xf32, #tpu.memory_space<vmem>>, vector<4x16xf32>
    %2 = arith.addf %0, %1 : vector<4x16xf32>
    %c0_2 = arith.constant 0 : index
    %c32 = arith.constant 32 : index
    %3 = vector.load %arg1[%c0_2, %c32] : memref<4x512xf32, #tpu.memory_space<vmem>>, vector<4x16xf32>
    %4 = arith.addf %2, %3 : vector<4x16xf32>
    %c0_3 = arith.constant 0 : index
    %c48 = arith.constant 48 : index
    %5 = vector.load %arg1[%c0_3, %c48] : memref<4x512xf32, #tpu.memory_space<vmem>>, vector<4x16xf32>
    %6 = arith.addf %4, %5 : vector<4x16xf32>
    %cst = arith.constant 2.500000e-01 : f32
    %7 = vector.broadcast %cst : f32 to vector<4x16xf32>
    %8 = arith.mulf %6, %7 : vector<4x16xf32>
    %c0_4 = arith.constant 0 : index
    %c64 = arith.constant 64 : index
    %9 = vector.load %arg1[%c0_4, %c64] : memref<4x512xf32, #tpu.memory_space<vmem>>, vector<4x16xf32>
    %c0_5 = arith.constant 0 : index
    %c80 = arith.constant 80 : index
    %10 = vector.load %arg1[%c0_5, %c80] : memref<4x512xf32, #tpu.memory_space<vmem>>, vector<4x16xf32>
    %11 = arith.addf %9, %10 : vector<4x16xf32>
    %c0_6 = arith.constant 0 : index
    %c96 = arith.constant 96 : index
    %12 = vector.load %arg1[%c0_6, %c96] : memref<4x512xf32, #tpu.memory_space<vmem>>, vector<4x16xf32>
    %13 = arith.addf %11, %12 : vector<4x16xf32>
    %c0_7 = arith.constant 0 : index
    %c112 = arith.constant 112 : index
    %14 = vector.load %arg1[%c0_7, %c112] : memref<4x512xf32, #tpu.memory_space<vmem>>, vector<4x16xf32>
    %15 = arith.addf %13, %14 : vector<4x16xf32>
    %cst_8 = arith.constant 2.500000e-01 : f32
    %16 = vector.broadcast %cst_8 : f32 to vector<4x16xf32>
    %17 = arith.mulf %15, %16 : vector<4x16xf32>
    %c0_9 = arith.constant 0 : index
    %c128 = arith.constant 128 : index
    %18 = vector.load %arg1[%c0_9, %c128] : memref<4x512xf32, #tpu.memory_space<vmem>>, vector<4x16xf32>
    %c0_10 = arith.constant 0 : index
    %c144 = arith.constant 144 : index
    %19 = vector.load %arg1[%c0_10, %c144] : memref<4x512xf32, #tpu.memory_space<vmem>>, vector<4x16xf32>
    %20 = arith.addf %18, %19 : vector<4x16xf32>
    %c0_11 = arith.constant 0 : index
    %c160 = arith.constant 160 : index
    %21 = vector.load %arg1[%c0_11, %c160] : memref<4x512xf32, #tpu.memory_space<vmem>>, vector<4x16xf32>
    %22 = arith.addf %20, %21 : vector<4x16xf32>
    %c0_12 = arith.constant 0 : index
    %c176 = arith.constant 176 : index
    %23 = vector.load %arg1[%c0_12, %c176] : memref<4x512xf32, #tpu.memory_space<vmem>>, vector<4x16xf32>
    %24 = arith.addf %22, %23 : vector<4x16xf32>
    %cst_13 = arith.constant 2.500000e-01 : f32
    %25 = vector.broadcast %cst_13 : f32 to vector<4x16xf32>
    %26 = arith.mulf %24, %25 : vector<4x16xf32>
    %c0_14 = arith.constant 0 : index
    %c192 = arith.constant 192 : index
    %27 = vector.load %arg1[%c0_14, %c192] : memref<4x512xf32, #tpu.memory_space<vmem>>, vector<4x16xf32>
    %c0_15 = arith.constant 0 : index
    %c208 = arith.constant 208 : index
    %28 = vector.load %arg1[%c0_15, %c208] : memref<4x512xf32, #tpu.memory_space<vmem>>, vector<4x16xf32>
    %29 = arith.addf %27, %28 : vector<4x16xf32>
    %c0_16 = arith.constant 0 : index
    %c224 = arith.constant 224 : index
    %30 = vector.load %arg1[%c0_16, %c224] : memref<4x512xf32, #tpu.memory_space<vmem>>, vector<4x16xf32>
    %31 = arith.addf %29, %30 : vector<4x16xf32>
    %c0_17 = arith.constant 0 : index
    %c240 = arith.constant 240 : index
    %32 = vector.load %arg1[%c0_17, %c240] : memref<4x512xf32, #tpu.memory_space<vmem>>, vector<4x16xf32>
    %33 = arith.addf %31, %32 : vector<4x16xf32>
    %cst_18 = arith.constant 2.500000e-01 : f32
    %34 = vector.broadcast %cst_18 : f32 to vector<4x16xf32>
    %35 = arith.mulf %33, %34 : vector<4x16xf32>
    %c0_19 = arith.constant 0 : index
    %c256 = arith.constant 256 : index
    %36 = vector.load %arg1[%c0_19, %c256] : memref<4x512xf32, #tpu.memory_space<vmem>>, vector<4x16xf32>
    %c0_20 = arith.constant 0 : index
    %c272 = arith.constant 272 : index
    %37 = vector.load %arg1[%c0_20, %c272] : memref<4x512xf32, #tpu.memory_space<vmem>>, vector<4x16xf32>
    %38 = arith.addf %36, %37 : vector<4x16xf32>
    %c0_21 = arith.constant 0 : index
    %c288 = arith.constant 288 : index
    %39 = vector.load %arg1[%c0_21, %c288] : memref<4x512xf32, #tpu.memory_space<vmem>>, vector<4x16xf32>
    %40 = arith.addf %38, %39 : vector<4x16xf32>
    %c0_22 = arith.constant 0 : index
    %c304 = arith.constant 304 : index
    %41 = vector.load %arg1[%c0_22, %c304] : memref<4x512xf32, #tpu.memory_space<vmem>>, vector<4x16xf32>
    %42 = arith.addf %40, %41 : vector<4x16xf32>
    %cst_23 = arith.constant 2.500000e-01 : f32
    %43 = vector.broadcast %cst_23 : f32 to vector<4x16xf32>
    %44 = arith.mulf %42, %43 : vector<4x16xf32>
    %c0_24 = arith.constant 0 : index
    %c320 = arith.constant 320 : index
    %45 = vector.load %arg1[%c0_24, %c320] : memref<4x512xf32, #tpu.memory_space<vmem>>, vector<4x16xf32>
    %c0_25 = arith.constant 0 : index
    %c336 = arith.constant 336 : index
    %46 = vector.load %arg1[%c0_25, %c336] : memref<4x512xf32, #tpu.memory_space<vmem>>, vector<4x16xf32>
    %47 = arith.addf %45, %46 : vector<4x16xf32>
    %c0_26 = arith.constant 0 : index
    %c352 = arith.constant 352 : index
    %48 = vector.load %arg1[%c0_26, %c352] : memref<4x512xf32, #tpu.memory_space<vmem>>, vector<4x16xf32>
    %49 = arith.addf %47, %48 : vector<4x16xf32>
    %c0_27 = arith.constant 0 : index
    %c368 = arith.constant 368 : index
    %50 = vector.load %arg1[%c0_27, %c368] : memref<4x512xf32, #tpu.memory_space<vmem>>, vector<4x16xf32>
    %51 = arith.addf %49, %50 : vector<4x16xf32>
    %cst_28 = arith.constant 2.500000e-01 : f32
    %52 = vector.broadcast %cst_28 : f32 to vector<4x16xf32>
    %53 = arith.mulf %51, %52 : vector<4x16xf32>
    %c0_29 = arith.constant 0 : index
    %c384 = arith.constant 384 : index
    %54 = vector.load %arg1[%c0_29, %c384] : memref<4x512xf32, #tpu.memory_space<vmem>>, vector<4x16xf32>
    %c0_30 = arith.constant 0 : index
    %c400 = arith.constant 400 : index
    %55 = vector.load %arg1[%c0_30, %c400] : memref<4x512xf32, #tpu.memory_space<vmem>>, vector<4x16xf32>
    %56 = arith.addf %54, %55 : vector<4x16xf32>
    %c0_31 = arith.constant 0 : index
    %c416 = arith.constant 416 : index
    %57 = vector.load %arg1[%c0_31, %c416] : memref<4x512xf32, #tpu.memory_space<vmem>>, vector<4x16xf32>
    %58 = arith.addf %56, %57 : vector<4x16xf32>
    %c0_32 = arith.constant 0 : index
    %c432 = arith.constant 432 : index
    %59 = vector.load %arg1[%c0_32, %c432] : memref<4x512xf32, #tpu.memory_space<vmem>>, vector<4x16xf32>
    %60 = arith.addf %58, %59 : vector<4x16xf32>
    %cst_33 = arith.constant 2.500000e-01 : f32
    %61 = vector.broadcast %cst_33 : f32 to vector<4x16xf32>
    %62 = arith.mulf %60, %61 : vector<4x16xf32>
    %c0_34 = arith.constant 0 : index
    %c448 = arith.constant 448 : index
    %63 = vector.load %arg1[%c0_34, %c448] : memref<4x512xf32, #tpu.memory_space<vmem>>, vector<4x16xf32>
    %c0_35 = arith.constant 0 : index
    %c464 = arith.constant 464 : index
    %64 = vector.load %arg1[%c0_35, %c464] : memref<4x512xf32, #tpu.memory_space<vmem>>, vector<4x16xf32>
    %65 = arith.addf %63, %64 : vector<4x16xf32>
    %c0_36 = arith.constant 0 : index
    %c480 = arith.constant 480 : index
    %66 = vector.load %arg1[%c0_36, %c480] : memref<4x512xf32, #tpu.memory_space<vmem>>, vector<4x16xf32>
    %67 = arith.addf %65, %66 : vector<4x16xf32>
    %c0_37 = arith.constant 0 : index
    %c496 = arith.constant 496 : index
    %68 = vector.load %arg1[%c0_37, %c496] : memref<4x512xf32, #tpu.memory_space<vmem>>, vector<4x16xf32>
    %69 = arith.addf %67, %68 : vector<4x16xf32>
    %cst_38 = arith.constant 2.500000e-01 : f32
    %70 = vector.broadcast %cst_38 : f32 to vector<4x16xf32>
    %71 = arith.mulf %69, %70 : vector<4x16xf32>
    %72 = tpu.concatenate %8, %17, %26, %35, %44, %53, %62, %71 in 1 : vector<4x16xf32>, vector<4x16xf32>, vector<4x16xf32>, vector<4x16xf32>, vector<4x16xf32>, vector<4x16xf32>, vector<4x16xf32>, vector<4x16xf32> -> vector<4x128xf32>
    %c0_39 = arith.constant 0 : index
    %c0_40 = arith.constant 0 : index
    %73 = vector.load %arg2[%c0_39, %c0_40] : memref<4x128xf32, #tpu.memory_space<vmem>>, vector<4x128xf32>
    tpu.vector_store %arg2[%c0_39, %c0_40], %72 {strides = array<i32>} : memref<4x128xf32, #tpu.memory_space<vmem>>, vector<4x128xf32>,
    return
  }
  func.func @transform_0(%arg0: i32) -> (i32, i32) {
    %c0_i32 = arith.constant 0 : i32
    %c0_i32_0 = arith.constant 0 : i32
    return %arg0, %c0_i32 : i32, i32
  }
  func.func @transform_1(%arg0: i32) -> (i32, i32) {
    %c0_i32 = arith.constant 0 : i32
    %c0_i32_0 = arith.constant 0 : i32
    return %arg0, %c0_i32 : i32, i32
  }
}

</mosaic_0001>

<llo_original>
// kernel: tpu_custom_call.1
$region0: #{tpu_custom_call.1}
  #allocation0 [shape = 'u32[]', space=smem, size = 0x4, offset = 0x4, fixed_abs, tag = 'smem constant byte address 0x4 - core index']
  #allocation1 [shape = 'u32[144,128]{1,0:T(1,128)}', space=vmem, size = 0x12000, scoped, tag = 'internal scratch']
  %s0 = inlined_call_operand.hbm [shape: f32[4,512], index: 0, kind: input, shape index: {}]
  %s1 = inlined_call_operand.hbm [shape: f32[4,128], index: 1, kind: output, shape index: {}]
  %s2 = sld [smem:[#allocation0]]
  $region18: #{tpu_custom_call.1} parent=0
    _
  %s4 = ssub.s32 1, %s2
  %s5 = scalar_select 0, %s4, %s2
  $region1: #{tpu_custom_call.1} parent=0
    #allocation2 [shape = 'u8[8192]{0}', space=vmem, size = 0x2000, scoped, tag = 'input window, operand 0, single buffered']
    #allocation3 [shape = 's32[1]{0}', space=sflag, size = 0x4, scoped, tag = 'scoped memory for tpu_custom_call.1']
    #allocation4 [shape = 's32[1]{0}', space=sflag, size = 0x4, scoped, tag = 'scoped memory for tpu_custom_call.1']
    #allocation5 [shape = 'u8[2048]{0}', space=vmem, size = 0x800, scoped, tag = 'output window, operand 0, single buffered']
    %6 = vsyncpa [#allocation3], 0
    %7 = vsyncpa [#allocation4], 0
    // Predicated region
    $region2: #{tpu_custom_call.1} parent=1 // pred_check
      _
    $region3: #{tpu_custom_call.1} parent=1 // pred_check_branch
      %9 = sbr.rel (0) target = $region5
    $region4: #{tpu_custom_call.1} parent=1 // pred_region
      %s11 = ssub.s32 256, 256
      %12 = vsyncadd [#allocation3], %s11
      %s14 = sshll.u32 [#allocation2], 4
      %s15 = int_to_ptr.vmem [resolvable:$true] %s14
      %17 = dma.hbm_to_vmem [thread:$0]  %s0, 256, %s15, [#allocation3]
    $region5: #{tpu_custom_call.1} parent=1 // pred_fallthru
      _
    // Predicated region
    $region6: #{tpu_custom_call.1} parent=1 // pred_check
      _
    $region7: #{tpu_custom_call.1} parent=1 // pred_check_branch
      %19 = sbr.rel (0) target = $region9
    $region8: #{tpu_custom_call.1} parent=1 // pred_region
      %20 = dma.done [#allocation3], 256
    $region9: #{tpu_custom_call.1} parent=1 // pred_fallthru
      _
    %v21 = vld [vmem:[#allocation2] sm:$0xf]
    %23 = vrot.lane.b32.xlu0 %v21, 112
    %v24 = vpop.permute.xlu0 %23
    %v26 = vadd.f32 %v21, %v24
    %27 = vrot.lane.b32.xlu0 %v21, 96
    %v28 = vpop.permute.xlu0 %27
    %v30 = vadd.f32 %v26, %v28
    %31 = vrot.lane.b32.xlu0 %v21, 80
    %v32 = vpop.permute.xlu0 %31
    %v34 = vadd.f32 %v30, %v32
    %v35 = vmul.f32 %v34, 0.25
    %v36 = vld [vmem:[#allocation2 + $0x4] sm:$0xf]
    %38 = vrot.lane.b32.xlu0 %v36, 112
    %v39 = vpop.permute.xlu0 %38
    %v41 = vadd.f32 %v36, %v39
    %42 = vrot.lane.b32.xlu0 %v36, 96
    %v43 = vpop.permute.xlu0 %42
    %v45 = vadd.f32 %v41, %v43
    %46 = vrot.lane.b32.xlu0 %v36, 80
    %v47 = vpop.permute.xlu0 %46
    %v49 = vadd.f32 %v45, %v47
    %v50 = vmul.f32 %v49, 0.25
    %v51 = vld [vmem:[#allocation2 + $0x8] sm:$0xf]
    %53 = vrot.lane.b32.xlu0 %v51, 112
    %v54 = vpop.permute.xlu0 %53
    %v56 = vadd.f32 %v51, %v54
    %57 = vrot.lane.b32.xlu0 %v51, 96
    %v58 = vpop.permute.xlu0 %57
    %v60 = vadd.f32 %v56, %v58
    %61 = vrot.lane.b32.xlu0 %v51, 80
    %v62 = vpop.permute.xlu0 %61
    %v64 = vadd.f32 %v60, %v62
    %v65 = vmul.f32 %v64, 0.25
    %v66 = vld [vmem:[#allocation2 + $0xc] sm:$0xf]
    %68 = vrot.lane.b32.xlu0 %v66, 112
    %v69 = vpop.permute.xlu0 %68
    %v71 = vadd.f32 %v66, %v69
    %72 = vrot.lane.b32.xlu0 %v66, 96
    %v73 = vpop.permute.xlu0 %72
    %v75 = vadd.f32 %v71, %v73
    %76 = vrot.lane.b32.xlu0 %v66, 80
    %v77 = vpop.permute.xlu0 %76
    %v79 = vadd.f32 %v75, %v77
    %v80 = vmul.f32 %v79, 0.25
    %82 = vrot.lane.b32.xlu0 %v35, 80
    %v83 = vpop.permute.xlu0 %82
    %86 = vrot.lane.b32.xlu0 %v50, 32
    %v87 = vpop.permute.xlu0 %86
    %89 = vrot.lane.b32.xlu0 %v50, 112
    %v90 = vpop.permute.xlu0 %89
    %93 = vrot.lane.b32.xlu0 %v65, 64
    %v94 = vpop.permute.xlu0 %93
    %96 = vrot.lane.b32.xlu0 %v65, 16
    %v97 = vpop.permute.xlu0 %96
    %100 = vrot.lane.b32.xlu0 %v80, 96
    %v101 = vpop.permute.xlu0 %100
    %103 = vrot.lane.b32.xlu0 %v80, 48
    %v104 = vpop.permute.xlu0 %103
    %vm106 = vcmask 130048
    %v107 = vsel %vm106, %v35, %v83
    %vm108 = vcmask 261120
    %v109 = vsel %vm108, %v107, %v87
    %vm110 = vcmask 392192
    %v111 = vsel %vm110, %v109, %v90
    %vm112 = vcmask 523264
    %v113 = vsel %vm112, %v111, %v94
    %vm114 = vcmask 654336
    %v115 = vsel %vm114, %v113, %v97
    %vm116 = vcmask 785408
    %v117 = vsel %vm116, %v115, %v101
    %vm118 = vcmask 916480
    %v119 = vsel %vm118, %v117, %v104
    %120 = vst [vmem:[#allocation5] sm:$0xf] %v119
    // Predicated region
    $region10: #{tpu_custom_call.1} parent=1 // pred_check
      _
    $region11: #{tpu_custom_call.1} parent=1 // pred_check_branch
      %122 = sbr.rel (0) target = $region13
    $region12: #{tpu_custom_call.1} parent=1 // pred_region
      %s124 = ssub.s32 64, 64
      %125 = vsyncadd [#allocation4], %s124
      %s127 = sshll.u32 [#allocation5], 4
      %s128 = int_to_ptr.vmem [resolvable:$true] %s127
      %130 = dma.vmem_to_hbm [thread:$0]  %s128, 64, %s1, [#allocation4]
    $region13: #{tpu_custom_call.1} parent=1 // pred_fallthru
      _
    // Predicated region
    $region14: #{tpu_custom_call.1} parent=1 // pred_check
      _
    $region15: #{tpu_custom_call.1} parent=1 // pred_check_branch
      %132 = sbr.rel (0) target = $region17
    $region16: #{tpu_custom_call.1} parent=1 // pred_region
      %133 = dma.done [#allocation4], 64
    $region17: #{tpu_custom_call.1} parent=1 // pred_fallthru
      _
    %134 = vsyncpa [#allocation3], 1
    %135 = vsyncpa [#allocation4], 1

</llo_original>
